<compile_context>
chip_gen: v7x
topology: tpu7x:2x2x1
jax: 0.10.0
libtpu: 0.0.40
codegen_flags: <defaults>
</compile_context>

<pallas_src>
import functools

import jax
import jax.numpy as jnp
import numpy as np
from jax.experimental import pallas as pl
from jax.experimental.pallas import tpu as pltpu
from jax.scipy.special import ndtri

_LANE_WIDTH = 512          # slab last dim (multiple of 128 -> unmasked wide stores)
_DEFAULT_TM = 512          # rows per grid step -> (512, 512) f32 block = 1 MiB


# ---------------------------------------------------------------------------
# Parameter init: replicates DiffQuant._initial_lookup_table(symmetric=True)
# ---------------------------------------------------------------------------
def make_lookup_table(num_bits: int, offset: float = 0.9677083) -> jnp.ndarray:
    variations = 2 ** num_bits
    grid = jnp.linspace(1.0 - offset, offset, variations + 1, dtype=jnp.float32)
    v = ndtri(grid)                              # norm.ppf
    values = 0.5 * v[:-1] + 0.5 * v[1:]          # midpoints of consecutive pairs
    values = jnp.sort(values)
    values = values / jnp.max(values)
    return values.astype(jnp.float32)            # shape (2**num_bits,)


# ---------------------------------------------------------------------------
# Pallas kernel: snap each weight element to the nearest lookup value via a
# sorted-threshold select chain (2 VALU ops per threshold, exact LUT outputs).
# ---------------------------------------------------------------------------
def _diffquant_kernel(lut_ref, thr_ref, w_ref, o_ref, *, num_values: int):
    # bf16 weights compute natively in bf16 (packed VALU on v6e/v7x); else f32.
    cdt = jnp.bfloat16 if w_ref.dtype == jnp.bfloat16 else jnp.float32
    w = w_ref[...].astype(cdt)                   # (TM, WIDTH) tile

    # Start at the smallest LUT value; each crossed midpoint bumps us to the
    # next LUT entry.  Strict '>' => exact-midpoint ties keep the lower index,
    # matching torch.argmin's first-minimum behaviour on a sorted table.
    best = jnp.full(w.shape, lut_ref[0].astype(cdt), dtype=cdt)
    for i in range(num_values - 1):              # small, fully unrolled
        best = jnp.where(w > thr_ref[i].astype(cdt),
                         lut_ref[i + 1].astype(cdt),
                         best)

    o_ref[...] = best.astype(o_ref.dtype)


def diff_quant(weight: jnp.ndarray, lookup_table: jnp.ndarray,
               *, tm: int = _DEFAULT_TM, width: int = _LANE_WIDTH,
               out_dtype=None) -> jnp.ndarray:
    """Forward pass of DiffQuant: returns nearest lookup-table value per element."""
    orig_shape = weight.shape
    out_dtype = weight.dtype if out_dtype is None else out_dtype
    num_values = int(lookup_table.shape[0])

    # Sorted LUT + midpoints (tiny wrapper-side work; kernel assumes ascending order).
    lut = jnp.sort(lookup_table.astype(jnp.float32))
    thr = 0.5 * (lut[:-1] + lut[1:])             # (num_values - 1,)

    flat = weight.reshape(-1)
    n = flat.size
    n_pad = (-n) % width                         # pad only to a slab-width multiple (<=511)
    if n_pad:
        # TODO(synk): misaligned tail could run as a separate tiny call to avoid
        # this full-tensor pad copy; aligned shapes take the zero-copy path.
        flat = jnp.pad(flat, (0, n_pad))
    w2 = flat.reshape(-1, width)                 # (rows, width) lane-dense slab
    rows = w2.shape[0]

    # Big tiles for throughput; clamp for small tensors (full-dim blocks are legal).
    tm = min(tm, rows)
    grid = (pl.cdiv(rows, tm),)                  # Pallas clamps the partial edge block

    kernel = functools.partial(_diffquant_kernel, num_values=num_values)

    out2 = pl.pallas_call(
        kernel,
        out_shape=jax.ShapeDtypeStruct((rows, width), out_dtype),
        grid=grid,
        in_specs=[
            pl.BlockSpec(memory_space=pltpu.MemorySpace.SMEM),   # lookup values
            pl.BlockSpec(memory_space=pltpu.MemorySpace.SMEM),   # midpoint thresholds
            pl.BlockSpec((tm, width), lambda i: (i, 0)),         # weight tile
        ],
        out_specs=pl.BlockSpec((tm, width), lambda i: (i, 0)),
        compiler_params=pltpu.CompilerParams(
            dimension_semantics=("parallel",),   # multi-step grid shards across v7x TCs
        ),
    )(lut, thr, w2)

    out_flat = out2.reshape(-1)
    if n_pad:
        out_flat = out_flat[:n]
    return out_flat.reshape(orig_shape)


# ---------------------------------------------------------------------------
# Reference (pure JAX) — mirrors the PyTorch forward exactly
# ---------------------------------------------------------------------------
def diff_quant_ref(weight, lookup_table):
    abs_diff = jnp.abs(weight[..., None] - lookup_table.reshape(1, -1))
    idx = jnp.argmin(abs_diff, axis=-1)
    return lookup_table[idx]


if __name__ == "__main__":
    num_bits = 4
    lut = make_lookup_table(num_bits)            # (16,) nf4 values in [-1, 1]

    key = jax.random.PRNGKey(0)
    # Small conv-like weight; kernel is shape-agnostic (elementwise quantization).
    x = jax.random.normal(key, (2, 4, 16, 16), dtype=jnp.float32) * 0.7

    out = diff_quant(x, lut)
    out = jax.block_until_ready(out)

    ref = diff_quant_ref(x, lut)
    np.testing.assert_allclose(np.asarray(out), np.asarray(ref), rtol=0, atol=0)
    assert out.shape == x.shape and out.dtype == x.dtype

    print("KERNEL_OK")
</pallas_src>

<mosaic_0001>
module attributes {stable_mosaic.version = 11 : i64} {
  func.func @_diffquant_kernel(%arg0: i32, %arg1: memref<16xf32, #tpu.memory_space<smem>>, %arg2: memref<15xf32, #tpu.memory_space<smem>>, %arg3: memref<4x512xf32, #tpu.memory_space<vmem>>, %arg4: memref<4x512xf32, #tpu.memory_space<vmem>>) attributes {dimension_semantics = [#tpu.dimension_semantics<parallel>], iteration_bounds = array<i64: 1>, scalar_prefetch = 0 : i64, scratch_operands = 0 : i64, tpu.core_type = #tpu.core_type<tc>, window_params = [{transform_indices = @transform_0, window_bounds = array<i64: 16>}, {transform_indices = @transform_1, window_bounds = array<i64: 15>}, {transform_indices = @transform_2, window_bounds = array<i64: 4, 512>}, {transform_indices = @transform_3, window_bounds = array<i64: 4, 512>}]} {
    %c0 = arith.constant 0 : index
    %c0_0 = arith.constant 0 : index
    %0 = vector.load %arg3[%c0, %c0_0] : memref<4x512xf32, #tpu.memory_space<vmem>>, vector<4x512xf32>
    %c0_1 = arith.constant 0 : index
    %1 = memref.load %arg1[%c0_1] : memref<16xf32, #tpu.memory_space<smem>>
    %2 = vector.broadcast %1 : f32 to vector<4x512xf32>
    %c0_2 = arith.constant 0 : index
    %3 = memref.load %arg2[%c0_2] : memref<15xf32, #tpu.memory_space<smem>>
    %4 = vector.broadcast %3 : f32 to vector<4x512xf32>
    %5 = arith.cmpf ogt, %0, %4 : vector<4x512xf32>
    %c1 = arith.constant 1 : index
    %6 = memref.load %arg1[%c1] : memref<16xf32, #tpu.memory_space<smem>>
    %7 = vector.broadcast %6 : f32 to vector<4x512xf32>
    %8 = arith.select %5, %7, %2 : vector<4x512xi1>, vector<4x512xf32>
    %c1_3 = arith.constant 1 : index
    %9 = memref.load %arg2[%c1_3] : memref<15xf32, #tpu.memory_space<smem>>
    %10 = vector.broadcast %9 : f32 to vector<4x512xf32>
    %11 = arith.cmpf ogt, %0, %10 : vector<4x512xf32>
    %c2 = arith.constant 2 : index
    %12 = memref.load %arg1[%c2] : memref<16xf32, #tpu.memory_space<smem>>
    %13 = vector.broadcast %12 : f32 to vector<4x512xf32>
    %14 = arith.select %11, %13, %8 : vector<4x512xi1>, vector<4x512xf32>
    %c2_4 = arith.constant 2 : index
    %15 = memref.load %arg2[%c2_4] : memref<15xf32, #tpu.memory_space<smem>>
    %16 = vector.broadcast %15 : f32 to vector<4x512xf32>
    %17 = arith.cmpf ogt, %0, %16 : vector<4x512xf32>
    %c3 = arith.constant 3 : index
    %18 = memref.load %arg1[%c3] : memref<16xf32, #tpu.memory_space<smem>>
    %19 = vector.broadcast %18 : f32 to vector<4x512xf32>
    %20 = arith.select %17, %19, %14 : vector<4x512xi1>, vector<4x512xf32>
    %c3_5 = arith.constant 3 : index
    %21 = memref.load %arg2[%c3_5] : memref<15xf32, #tpu.memory_space<smem>>
    %22 = vector.broadcast %21 : f32 to vector<4x512xf32>
    %23 = arith.cmpf ogt, %0, %22 : vector<4x512xf32>
    %c4 = arith.constant 4 : index
    %24 = memref.load %arg1[%c4] : memref<16xf32, #tpu.memory_space<smem>>
    %25 = vector.broadcast %24 : f32 to vector<4x512xf32>
    %26 = arith.select %23, %25, %20 : vector<4x512xi1>, vector<4x512xf32>
    %c4_6 = arith.constant 4 : index
    %27 = memref.load %arg2[%c4_6] : memref<15xf32, #tpu.memory_space<smem>>
    %28 = vector.broadcast %27 : f32 to vector<4x512xf32>
    %29 = arith.cmpf ogt, %0, %28 : vector<4x512xf32>
    %c5 = arith.constant 5 : index
    %30 = memref.load %arg1[%c5] : memref<16xf32, #tpu.memory_space<smem>>
    %31 = vector.broadcast %30 : f32 to vector<4x512xf32>
    %32 = arith.select %29, %31, %26 : vector<4x512xi1>, vector<4x512xf32>
    %c5_7 = arith.constant 5 : index
    %33 = memref.load %arg2[%c5_7] : memref<15xf32, #tpu.memory_space<smem>>
    %34 = vector.broadcast %33 : f32 to vector<4x512xf32>
    %35 = arith.cmpf ogt, %0, %34 : vector<4x512xf32>
    %c6 = arith.constant 6 : index
    %36 = memref.load %arg1[%c6] : memref<16xf32, #tpu.memory_space<smem>>
    %37 = vector.broadcast %36 : f32 to vector<4x512xf32>
    %38 = arith.select %35, %37, %32 : vector<4x512xi1>, vector<4x512xf32>
    %c6_8 = arith.constant 6 : index
    %39 = memref.load %arg2[%c6_8] : memref<15xf32, #tpu.memory_space<smem>>
    %40 = vector.broadcast %39 : f32 to vector<4x512xf32>
    %41 = arith.cmpf ogt, %0, %40 : vector<4x512xf32>
    %c7 = arith.constant 7 : index
    %42 = memref.load %arg1[%c7] : memref<16xf32, #tpu.memory_space<smem>>
    %43 = vector.broadcast %42 : f32 to vector<4x512xf32>
    %44 = arith.select %41, %43, %38 : vector<4x512xi1>, vector<4x512xf32>
    %c7_9 = arith.constant 7 : index
    %45 = memref.load %arg2[%c7_9] : memref<15xf32, #tpu.memory_space<smem>>
    %46 = vector.broadcast %45 : f32 to vector<4x512xf32>
    %47 = arith.cmpf ogt, %0, %46 : vector<4x512xf32>
    %c8 = arith.constant 8 : index
    %48 = memref.load %arg1[%c8] : memref<16xf32, #tpu.memory_space<smem>>
    %49 = vector.broadcast %48 : f32 to vector<4x512xf32>
    %50 = arith.select %47, %49, %44 : vector<4x512xi1>, vector<4x512xf32>
    %c8_10 = arith.constant 8 : index
    %51 = memref.load %arg2[%c8_10] : memref<15xf32, #tpu.memory_space<smem>>
    %52 = vector.broadcast %51 : f32 to vector<4x512xf32>
    %53 = arith.cmpf ogt, %0, %52 : vector<4x512xf32>
    %c9 = arith.constant 9 : index
    %54 = memref.load %arg1[%c9] : memref<16xf32, #tpu.memory_space<smem>>
    %55 = vector.broadcast %54 : f32 to vector<4x512xf32>
    %56 = arith.select %53, %55, %50 : vector<4x512xi1>, vector<4x512xf32>
    %c9_11 = arith.constant 9 : index
    %57 = memref.load %arg2[%c9_11] : memref<15xf32, #tpu.memory_space<smem>>
    %58 = vector.broadcast %57 : f32 to vector<4x512xf32>
    %59 = arith.cmpf ogt, %0, %58 : vector<4x512xf32>
    %c10 = arith.constant 10 : index
    %60 = memref.load %arg1[%c10] : memref<16xf32, #tpu.memory_space<smem>>
    %61 = vector.broadcast %60 : f32 to vector<4x512xf32>
    %62 = arith.select %59, %61, %56 : vector<4x512xi1>, vector<4x512xf32>
    %c10_12 = arith.constant 10 : index
    %63 = memref.load %arg2[%c10_12] : memref<15xf32, #tpu.memory_space<smem>>
    %64 = vector.broadcast %63 : f32 to vector<4x512xf32>
    %65 = arith.cmpf ogt, %0, %64 : vector<4x512xf32>
    %c11 = arith.constant 11 : index
    %66 = memref.load %arg1[%c11] : memref<16xf32, #tpu.memory_space<smem>>
    %67 = vector.broadcast %66 : f32 to vector<4x512xf32>
    %68 = arith.select %65, %67, %62 : vector<4x512xi1>, vector<4x512xf32>
    %c11_13 = arith.constant 11 : index
    %69 = memref.load %arg2[%c11_13] : memref<15xf32, #tpu.memory_space<smem>>
    %70 = vector.broadcast %69 : f32 to vector<4x512xf32>
    %71 = arith.cmpf ogt, %0, %70 : vector<4x512xf32>
    %c12 = arith.constant 12 : index
    %72 = memref.load %arg1[%c12] : memref<16xf32, #tpu.memory_space<smem>>
    %73 = vector.broadcast %72 : f32 to vector<4x512xf32>
    %74 = arith.select %71, %73, %68 : vector<4x512xi1>, vector<4x512xf32>
    %c12_14 = arith.constant 12 : index
    %75 = memref.load %arg2[%c12_14] : memref<15xf32, #tpu.memory_space<smem>>
    %76 = vector.broadcast %75 : f32 to vector<4x512xf32>
    %77 = arith.cmpf ogt, %0, %76 : vector<4x512xf32>
    %c13 = arith.constant 13 : index
    %78 = memref.load %arg1[%c13] : memref<16xf32, #tpu.memory_space<smem>>
    %79 = vector.broadcast %78 : f32 to vector<4x512xf32>
    %80 = arith.select %77, %79, %74 : vector<4x512xi1>, vector<4x512xf32>
    %c13_15 = arith.constant 13 : index
    %81 = memref.load %arg2[%c13_15] : memref<15xf32, #tpu.memory_space<smem>>
    %82 = vector.broadcast %81 : f32 to vector<4x512xf32>
    %83 = arith.cmpf ogt, %0, %82 : vector<4x512xf32>
    %c14 = arith.constant 14 : index
    %84 = memref.load %arg1[%c14] : memref<16xf32, #tpu.memory_space<smem>>
    %85 = vector.broadcast %84 : f32 to vector<4x512xf32>
    %86 = arith.select %83, %85, %80 : vector<4x512xi1>, vector<4x512xf32>
    %c14_16 = arith.constant 14 : index
    %87 = memref.load %arg2[%c14_16] : memref<15xf32, #tpu.memory_space<smem>>
    %88 = vector.broadcast %87 : f32 to vector<4x512xf32>
    %89 = arith.cmpf ogt, %0, %88 : vector<4x512xf32>
    %c15 = arith.constant 15 : index
    %90 = memref.load %arg1[%c15] : memref<16xf32, #tpu.memory_space<smem>>
    %91 = vector.broadcast %90 : f32 to vector<4x512xf32>
    %92 = arith.select %89, %91, %86 : vector<4x512xi1>, vector<4x512xf32>
    %c0_17 = arith.constant 0 : index
    %c0_18 = arith.constant 0 : index
    %93 = vector.load %arg4[%c0_17, %c0_18] : memref<4x512xf32, #tpu.memory_space<vmem>>, vector<4x512xf32>
    tpu.vector_store %arg4[%c0_17, %c0_18], %92 {strides = array<i32>} : memref<4x512xf32, #tpu.memory_space<vmem>>, vector<4x512xf32>,
    return
  }
  func.func @transform_0(%arg0: i32) -> i32 {
    %c0_i32 = arith.constant 0 : i32
    %c0_i32_0 = arith.constant 0 : i32
    return %c0_i32 : i32
  }
  func.func @transform_1(%arg0: i32) -> i32 {
    %c0_i32 = arith.constant 0 : i32
    %c0_i32_0 = arith.constant 0 : i32
    return %c0_i32 : i32
  }
  func.func @transform_2(%arg0: i32) -> (i32, i32) {
    %c0_i32 = arith.constant 0 : i32
    %c0_i32_0 = arith.constant 0 : i32
    return %arg0, %c0_i32 : i32, i32
  }
  func.func @transform_3(%arg0: i32) -> (i32, i32) {
    %c0_i32 = arith.constant 0 : i32
    %c0_i32_0 = arith.constant 0 : i32
    return %arg0, %c0_i32 : i32, i32
  }
}

</mosaic_0001>

<llo_original>
// kernel: tpu_custom_call.1
$region0: #{tpu_custom_call.1}
  #allocation0 [shape = 'u32[]', space=smem, size = 0x4, offset = 0x4, fixed_abs, tag = 'smem constant byte address 0x4 - core index']
  #allocation1 [shape = 'u32[144,128]{1,0:T(1,128)}', space=vmem, size = 0x12000, scoped, tag = 'internal scratch']
  %s0 = inlined_call_operand.hbm [shape: f32[16], index: 0, kind: input, shape index: {}]
  %s1 = inlined_call_operand.vmem [shape: f32[15], index: 1, kind: input, shape index: {}]
  %s2 = inlined_call_operand.hbm [shape: f32[4,512], index: 2, kind: input, shape index: {}]
  %s3 = inlined_call_operand.hbm [shape: f32[4,512], index: 3, kind: output, shape index: {}]
  %s4 = sld [smem:[#allocation0]]
  $region34: #{tpu_custom_call.1} parent=0
    _
  %s6 = ssub.s32 1, %s4
  %s7 = scalar_select 0, %s6, %s4
  $region1: #{tpu_custom_call.1} parent=0
    #allocation2 [shape = 'u8[512]{0}', space=smem, size = 0x200, scoped, tag = 'input window, operand 0, single buffered']
    #allocation3 [shape = 's32[1]{0}', space=sflag, size = 0x4, scoped, tag = 'scoped memory for tpu_custom_call.1']
    #allocation4 [shape = 's32[1]{0}', space=sflag, size = 0x4, scoped, tag = 'scoped memory for tpu_custom_call.1']
    #allocation5 [shape = 's32[1]{0}', space=sflag, size = 0x4, scoped, tag = 'scoped memory for tpu_custom_call.1']
    #allocation6 [shape = 's32[1]{0}', space=sflag, size = 0x4, scoped, tag = 'scoped memory for tpu_custom_call.1']
    #allocation7 [shape = 'u8[512]{0}', space=smem, size = 0x200, scoped, tag = 'input window, operand 1, single buffered']
    #allocation8 [shape = 'u8[8192]{0}', space=vmem, size = 0x2000, scoped, tag = 'input window, operand 2, single buffered']
    #allocation9 [shape = 'u8[8192]{0}', space=vmem, size = 0x2000, scoped, tag = 'output window, operand 0, single buffered']
    %8 = vsyncpa [#allocation5], 0
    %9 = vsyncpa [#allocation6], 0
    %10 = vsyncpa [#allocation3], 0
    %11 = vsyncpa [#allocation4], 0
    // Predicated region
    $region2: #{tpu_custom_call.1} parent=1 // pred_check
      _
    $region3: #{tpu_custom_call.1} parent=1 // pred_check_branch
      %13 = sbr.rel (0) target = $region5
    $region4: #{tpu_custom_call.1} parent=1 // pred_region
      %s15 = ssub.s32 16, 16
      %16 = vsyncadd [#allocation5], %s15
      %19 = dma.hbm_to_smem %s0, 16, [#allocation2], [#allocation5]
    $region5: #{tpu_custom_call.1} parent=1 // pred_fallthru
      _
    // Predicated region
    $region6: #{tpu_custom_call.1} parent=1 // pred_check
      _
    $region7: #{tpu_custom_call.1} parent=1 // pred_check_branch
      %21 = sbr.rel (0) target = $region9
    $region8: #{tpu_custom_call.1} parent=1 // pred_region
      %s23 = ssub.s32 16, 16
      %24 = vsyncadd [#allocation6], %s23
      %s26 = sshll.u32 %s1, 4
      %s27 = int_to_ptr.vmem [resolvable:$true] %s26
      %29 = dma.vmem_to_smem %s27, 16, [#allocation7], [#allocation6]
    $region9: #{tpu_custom_call.1} parent=1 // pred_fallthru
      _
    // Predicated region
    $region10: #{tpu_custom_call.1} parent=1 // pred_check
      _
    $region11: #{tpu_custom_call.1} parent=1 // pred_check_branch
      %31 = sbr.rel (0) target = $region13
    $region12: #{tpu_custom_call.1} parent=1 // pred_region
      %s33 = ssub.s32 256, 256
      %34 = vsyncadd [#allocation3], %s33
      %s36 = sshll.u32 [#allocation8], 4
      %s37 = int_to_ptr.vmem [resolvable:$true] %s36
      %39 = dma.hbm_to_vmem [thread:$0]  %s2, 256, %s37, [#allocation3]
    $region13: #{tpu_custom_call.1} parent=1 // pred_fallthru
      _
    // Predicated region
    $region14: #{tpu_custom_call.1} parent=1 // pred_check
      _
    $region15: #{tpu_custom_call.1} parent=1 // pred_check_branch
      %41 = sbr.rel (0) target = $region17
    $region16: #{tpu_custom_call.1} parent=1 // pred_region
      %42 = dma.done [#allocation5], 16
    $region17: #{tpu_custom_call.1} parent=1 // pred_fallthru
      _
    // Predicated region
    $region18: #{tpu_custom_call.1} parent=1 // pred_check
      _
    $region19: #{tpu_custom_call.1} parent=1 // pred_check_branch
      %44 = sbr.rel (0) target = $region21
    $region20: #{tpu_custom_call.1} parent=1 // pred_region
      %45 = dma.done [#allocation6], 16
    $region21: #{tpu_custom_call.1} parent=1 // pred_fallthru
      _
    // Predicated region
    $region22: #{tpu_custom_call.1} parent=1 // pred_check
      _
    $region23: #{tpu_custom_call.1} parent=1 // pred_check_branch
      %47 = sbr.rel (0) target = $region25
    $region24: #{tpu_custom_call.1} parent=1 // pred_region
      %48 = dma.done [#allocation3], 256
    $region25: #{tpu_custom_call.1} parent=1 // pred_fallthru
      _
    %49 = sfence
    %v50 = vld [vmem:[#allocation8] sm:$0xff]
    %v51 = vld [vmem:[#allocation8 + $0x8] sm:$0xff]
    %s52 = sld [smem:[#allocation2]]
    %v53 = vstv %s52
    %s54 = sld [smem:[#allocation7]]
    %v55 = vstv %s54
    %vm56 = vcmp.gt.f32.partialorder %v50, %v55
    %vm57 = vcmp.gt.f32.partialorder %v51, %v55
    %s58 = sld [smem:[#allocation2 + $0x1]]
    %v59 = vstv %s58
    %v60 = vsel %vm56, %v59, %v53
    %v61 = vsel %vm57, %v59, %v53
    %s62 = sld [smem:[#allocation7 + $0x1]]
    %v63 = vstv %s62
    %vm64 = vcmp.gt.f32.partialorder %v50, %v63
    %vm65 = vcmp.gt.f32.partialorder %v51, %v63
    %s66 = sld [smem:[#allocation2 + $0x2]]
    %v67 = vstv %s66
    %v68 = vsel %vm64, %v67, %v60
    %v69 = vsel %vm65, %v67, %v61
    %s70 = sld [smem:[#allocation7 + $0x2]]
    %v71 = vstv %s70
    %vm72 = vcmp.gt.f32.partialorder %v50, %v71
    %vm73 = vcmp.gt.f32.partialorder %v51, %v71
    %s74 = sld [smem:[#allocation2 + $0x3]]
    %v75 = vstv %s74
    %v76 = vsel %vm72, %v75, %v68
    %v77 = vsel %vm73, %v75, %v69
    %s78 = sld [smem:[#allocation7 + $0x3]]
    %v79 = vstv %s78
    %vm80 = vcmp.gt.f32.partialorder %v50, %v79
    %vm81 = vcmp.gt.f32.partialorder %v51, %v79
    %s82 = sld [smem:[#allocation2 + $0x4]]
    %v83 = vstv %s82
    %v84 = vsel %vm80, %v83, %v76
    %v85 = vsel %vm81, %v83, %v77
    %s86 = sld [smem:[#allocation7 + $0x4]]
    %v87 = vstv %s86
    %vm88 = vcmp.gt.f32.partialorder %v50, %v87
    %vm89 = vcmp.gt.f32.partialorder %v51, %v87
    %s90 = sld [smem:[#allocation2 + $0x5]]
    %v91 = vstv %s90
    %v92 = vsel %vm88, %v91, %v84
    %v93 = vsel %vm89, %v91, %v85
    %s94 = sld [smem:[#allocation7 + $0x5]]
    %v95 = vstv %s94
    %vm96 = vcmp.gt.f32.partialorder %v50, %v95
    %vm97 = vcmp.gt.f32.partialorder %v51, %v95
    %s98 = sld [smem:[#allocation2 + $0x6]]
    %v99 = vstv %s98
    %v100 = vsel %vm96, %v99, %v92
    %v101 = vsel %vm97, %v99, %v93
    %s102 = sld [smem:[#allocation7 + $0x6]]
    %v103 = vstv %s102
    %vm104 = vcmp.gt.f32.partialorder %v50, %v103
    %vm105 = vcmp.gt.f32.partialorder %v51, %v103
    %s106 = sld [smem:[#allocation2 + $0x7]]
    %v107 = vstv %s106
    %v108 = vsel %vm104, %v107, %v100
    %v109 = vsel %vm105, %v107, %v101
    %s110 = sld [smem:[#allocation7 + $0x7]]
    %v111 = vstv %s110
    %vm112 = vcmp.gt.f32.partialorder %v50, %v111
    %vm113 = vcmp.gt.f32.partialorder %v51, %v111
    %s114 = sld [smem:[#allocation2 + $0x8]]
    %v115 = vstv %s114
    %v116 = vsel %vm112, %v115, %v108
    %v117 = vsel %vm113, %v115, %v109
    %s118 = sld [smem:[#allocation7 + $0x8]]
    %v119 = vstv %s118
    %vm120 = vcmp.gt.f32.partialorder %v50, %v119
    %vm121 = vcmp.gt.f32.partialorder %v51, %v119
    %s122 = sld [smem:[#allocation2 + $0x9]]
    %v123 = vstv %s122
    %v124 = vsel %vm120, %v123, %v116
    %v125 = vsel %vm121, %v123, %v117
    %s126 = sld [smem:[#allocation7 + $0x9]]
    %v127 = vstv %s126
    %vm128 = vcmp.gt.f32.partialorder %v50, %v127
    %vm129 = vcmp.gt.f32.partialorder %v51, %v127
    %s130 = sld [smem:[#allocation2 + $0xa]]
    %v131 = vstv %s130
    %v132 = vsel %vm128, %v131, %v124
    %v133 = vsel %vm129, %v131, %v125
    %s134 = sld [smem:[#allocation7 + $0xa]]
    %v135 = vstv %s134
    %vm136 = vcmp.gt.f32.partialorder %v50, %v135
    %vm137 = vcmp.gt.f32.partialorder %v51, %v135
    %s138 = sld [smem:[#allocation2 + $0xb]]
    %v139 = vstv %s138
    %v140 = vsel %vm136, %v139, %v132
    %v141 = vsel %vm137, %v139, %v133
    %s142 = sld [smem:[#allocation7 + $0xb]]
    %v143 = vstv %s142
    %vm144 = vcmp.gt.f32.partialorder %v50, %v143
    %vm145 = vcmp.gt.f32.partialorder %v51, %v143
    %s146 = sld [smem:[#allocation2 + $0xc]]
    %v147 = vstv %s146
    %v148 = vsel %vm144, %v147, %v140
    %v149 = vsel %vm145, %v147, %v141
    %s150 = sld [smem:[#allocation7 + $0xc]]
    %v151 = vstv %s150
    %vm152 = vcmp.gt.f32.partialorder %v50, %v151
    %vm153 = vcmp.gt.f32.partialorder %v51, %v151
    %s154 = sld [smem:[#allocation2 + $0xd]]
    %v155 = vstv %s154
    %v156 = vsel %vm152, %v155, %v148
    %v157 = vsel %vm153, %v155, %v149
    %s158 = sld [smem:[#allocation7 + $0xd]]
    %v159 = vstv %s158
    %vm160 = vcmp.gt.f32.partialorder %v50, %v159
    %vm161 = vcmp.gt.f32.partialorder %v51, %v159
    %s162 = sld [smem:[#allocation2 + $0xe]]
    %v163 = vstv %s162
    %v164 = vsel %vm160, %v163, %v156
    %v165 = vsel %vm161, %v163, %v157
    %s166 = sld [smem:[#allocation7 + $0xe]]
    %v167 = vstv %s166
    %vm168 = vcmp.gt.f32.partialorder %v50, %v167
    %vm169 = vcmp.gt.f32.partialorder %v51, %v167
    %s170 = sld [smem:[#allocation2 + $0xf]]
    %v171 = vstv %s170
    %v172 = vsel %vm168, %v171, %v164
    %v173 = vsel %vm169, %v171, %v165
    %174 = vst [vmem:[#allocation9] sm:$0xff] %v172
    %175 = vst [vmem:[#allocation9 + $0x8] sm:$0xff] %v173
    // Predicated region
    $region26: #{tpu_custom_call.1} parent=1 // pred_check
      _
    $region27: #{tpu_custom_call.1} parent=1 // pred_check_branch
      %177 = sbr.rel (0) target = $region29
    $region28: #{tpu_custom_call.1} parent=1 // pred_region
      %s179 = ssub.s32 256, 256
      %180 = vsyncadd [#allocation4], %s179
      %s182 = sshll.u32 [#allocation9], 4
      %s183 = int_to_ptr.vmem [resolvable:$true] %s182
      %185 = dma.vmem_to_hbm [thread:$0]  %s183, 256, %s3, [#allocation4]
    $region29: #{tpu_custom_call.1} parent=1 // pred_fallthru
      _
    // Predicated region
    $region30: #{tpu_custom_call.1} parent=1 // pred_check
      _
    $region31: #{tpu_custom_call.1} parent=1 // pred_check_branch
      %187 = sbr.rel (0) target = $region33
    $region32: #{tpu_custom_call.1} parent=1 // pred_region
      %188 = dma.done [#allocation4], 256
    $region33: #{tpu_custom_call.1} parent=1 // pred_fallthru
      _
    %189 = vsyncpa [#allocation3], 1
    %190 = vsyncpa [#allocation4], 1
    %191 = vsyncpa [#allocation5], 1
    %192 = vsyncpa [#allocation6], 1

</llo_original>
